<compile_context>
chip_gen: v5e
topology: v5e:2x2
jax: 0.10.0
libtpu: 0.0.40
codegen_flags: <defaults>
</compile_context>

<pallas_src>
import functools

import numpy as np
import jax
import jax.numpy as jnp
from jax.experimental import pallas as pl
from jax.experimental.pallas import tpu as pltpu


# ---------------------------------------------------------------------------
# Kernel 1: direct conv (tap-accumulated matmuls) + per-tile partial statistics
# ---------------------------------------------------------------------------
def _conv_stats_kernel(x_ref, w_ref, mask_ref, y_ref, sum_ref, sumsq_ref,
                       *, tap_offsets):
    """One (batch, row-tile) grid step.

    x_ref:    (Cin, tile_len)   bf16  flat window of padded input (rows + halo)
    w_ref:    (kh*kw, Cout, Cin) bf16
    mask_ref: (1, tm)           f32   1.0 at spatially valid wide positions
    y_ref:    (Cout, tm)        f32   pre-BN conv output, wide spatial layout
    sum_ref / sumsq_ref: (Cout, 1) f32  per-grid-step partial statistics
    """
    tm = y_ref.shape[-1]

    acc = None
    for t, off in enumerate(tap_offsets):          # static Python unroll
        slab = x_ref[:, off:off + tm]              # (Cin, tm), static slice
        part = jnp.dot(w_ref[t], slab,             # (Cout, Cin) @ (Cin, tm)
                       preferred_element_type=jnp.float32)
        acc = part if acc is None else acc + part
    y_ref[...] = acc

    # Partial BatchNorm statistics.  mask is 0/1, so masked*acc == mask*acc^2.
    masked = acc * mask_ref[...]
    sum_ref[...] = jnp.sum(masked, axis=1, keepdims=True)
    sumsq_ref[...] = jnp.sum(masked * acc, axis=1, keepdims=True)


# ---------------------------------------------------------------------------
# Kernel 2: fused BatchNorm affine + ReLU + wide->NCHW crop
# ---------------------------------------------------------------------------
def _bn_relu_kernel(y_ref, scale_ref, shift_ref, o_ref):
    """y_ref: (Cout, TH, Wp) f32, scale/shift: (Cout,1,1), o_ref: (Cout, TH, Wout)."""
    wout = o_ref.shape[-1]
    y = y_ref[:, :, :wout]                          # crop wide columns
    o_ref[...] = jnp.maximum(y * scale_ref[...] + shift_ref[...], 0.0)


def _rows_per_tile(hout, wp, cout):
    """Output rows per tile: keep the f32 (Cout, TH*Wp) tile around <= 2 MiB."""
    budget_elems = (2 * 1024 * 1024) // 4 // max(cout, 1)
    th = budget_elems // max(wp, 1)
    if th >= hout:
        return hout                                  # single tile per batch elem
    return max(8, (th // 8) * 8)                     # multiple of 8 for blocking


def conv2d_batchnorm_relu(x, weight, bias, gamma, beta, *, stride=1, padding=1,
                          dilation=1, eps=1e-5):
    """Forward pass of conv2DBatchNormRelu (is_batchnorm=True).

    x:      (N, Cin, H, W)  f32 (NCHW, as PyTorch)
    weight: (Cout, Cin, kh, kw);  bias: (Cout,) (cancelled by train-mode BN)
    gamma, beta: (Cout,) BatchNorm affine params
    returns (N, Cout, Hout, Wout) f32
    """
    if stride != 1:
        # TODO(synk): stride > 1 needs strided slab gathers; not implemented.
        raise NotImplementedError("Pallas conv2DBatchNormRelu supports stride=1.")
    del bias  # exactly cancelled by train-mode BatchNorm (see header comment)

    nb, cin, h, w = x.shape
    cout, _, kh, kw = weight.shape
    hp, wp = h + 2 * padding, w + 2 * padding
    hout = hp - dilation * (kh - 1)
    wout = wp - dilation * (kw - 1)

    th = _rows_per_tile(hout, wp, cout)              # output rows per tile
    num_m = -(-hout // th)                           # row tiles per batch element
    hout_pad = num_m * th
    tm = th * wp                                     # wide spatial lanes per tile
    off_max = (kh - 1) * dilation * wp + (kw - 1) * dilation
    tile_len = tm + off_max                          # tile + tap halo

    # ---- padded input, flattened row-major over the padded spatial grid ------
    xp = jnp.pad(x, ((0, 0), (0, 0), (padding, padding), (padding, padding)))
    xf = xp.reshape(nb, cin, hp * wp)
    xf = jnp.pad(xf, ((0, 0), (0, 0), (0, num_m * tm + off_max - hp * wp)))
    if num_m == 1:
        xt = xf.reshape(nb, 1, cin, tile_len)
    else:  # slightly overlapping row-tile windows (halo only, ~1x HBM traffic)
        xt = jnp.stack([xf[:, :, i * tm:i * tm + tile_len] for i in range(num_m)],
                       axis=1)
    xt = xt.reshape(nb * num_m, cin, tile_len).astype(jnp.bfloat16)

    # weights as (kh*kw, Cout, Cin) bf16; tap offsets into the flat window
    w2 = jnp.transpose(weight, (2, 3, 0, 1)).reshape(kh * kw, cout, cin)
    w2 = w2.astype(jnp.bfloat16)
    tap_offsets = tuple(ki * dilation * wp + kj * dilation
                        for ki in range(kh) for kj in range(kw))

    # validity mask over the wide flat positions (static, built once on host)
    q = np.arange(num_m * tm)
    valid = ((q // wp) < hout) & ((q % wp) < wout)
    mask = jnp.asarray(valid.reshape(num_m, 1, tm).astype(np.float32))

    grid = (nb, num_m)

    # ---- pass 1: conv + partial statistics -----------------------------------
    y, psum, psumsq = pl.pallas_call(
        functools.partial(_conv_stats_kernel, tap_offsets=tap_offsets),
        out_shape=(
            jax.ShapeDtypeStruct((nb * num_m, cout, tm), jnp.float32),
            jax.ShapeDtypeStruct((nb * num_m, cout, 1), jnp.float32),
            jax.ShapeDtypeStruct((nb * num_m, cout, 1), jnp.float32),
        ),
        grid_spec=pltpu.PrefetchScalarGridSpec(
            num_scalar_prefetch=0,
            grid=grid,
            in_specs=[
                pl.BlockSpec((None, cin, tile_len),
                             lambda b, i: (b * num_m + i, 0, 0)),
                pl.BlockSpec((kh * kw, cout, cin), lambda b, i: (0, 0, 0)),
                pl.BlockSpec((None, 1, tm), lambda b, i: (i, 0, 0)),
            ],
            out_specs=(
                pl.BlockSpec((None, cout, tm),
                             lambda b, i: (b * num_m + i, 0, 0)),
                pl.BlockSpec((None, cout, 1),
                             lambda b, i: (b * num_m + i, 0, 0)),
                pl.BlockSpec((None, cout, 1),
                             lambda b, i: (b * num_m + i, 0, 0)),
            ),
        ),
        compiler_params=pltpu.CompilerParams(
            dimension_semantics=("parallel", "parallel")),
    )(xt, w2, mask)

    # ---- BatchNorm batch statistics (train mode, biased variance) ------------
    # Note: E[y^2]-mean^2 in f32 is fine at these magnitudes; for very large
    # activations a pivoted/Welford accumulation would be safer.
    count = nb * hout * wout
    ch_sum = jnp.sum(psum, axis=(0, 2))
    ch_sumsq = jnp.sum(psumsq, axis=(0, 2))
    mean = ch_sum / count
    var = ch_sumsq / count - mean * mean
    inv_std = jax.lax.rsqrt(var + eps)
    scale = (gamma * inv_std).astype(jnp.float32).reshape(cout, 1, 1)
    shift = (beta - mean * gamma * inv_std).astype(jnp.float32).reshape(cout, 1, 1)

    # ---- pass 2: BN affine + ReLU, cropped + written directly as NCHW --------
    y4 = y.reshape(nb * num_m, cout, th, wp)         # metadata-only reshape
    out = pl.pallas_call(
        _bn_relu_kernel,
        out_shape=jax.ShapeDtypeStruct((nb, cout, hout_pad, wout), jnp.float32),
        grid_spec=pltpu.PrefetchScalarGridSpec(
            num_scalar_prefetch=0,
            grid=grid,
            in_specs=[
                pl.BlockSpec((None, cout, th, wp),
                             lambda b, i: (b * num_m + i, 0, 0, 0)),
                pl.BlockSpec((cout, 1, 1), lambda b, i: (0, 0, 0)),
                pl.BlockSpec((cout, 1, 1), lambda b, i: (0, 0, 0)),
            ],
            out_specs=pl.BlockSpec((None, cout, th, wout),
                                   lambda b, i: (b, 0, i, 0)),
        ),
        compiler_params=pltpu.CompilerParams(
            dimension_semantics=("parallel", "parallel")),
    )(y4, scale, shift)

    if hout_pad != hout:
        out = out[:, :, :hout, :]                    # drop padded rows (no-op here)
    return out


# ---------------------------------------------------------------------------
# Pure-JAX reference (includes conv bias, to demonstrate the BN cancellation)
# ---------------------------------------------------------------------------
def _reference(x, weight, bias, gamma, beta, *, stride, padding, dilation, eps):
    y = jax.lax.conv_general_dilated(
        x, weight, window_strides=(stride, stride),
        padding=[(padding, padding), (padding, padding)],
        rhs_dilation=(dilation, dilation),
        dimension_numbers=("NCHW", "OIHW", "NCHW"))
    y = y + bias[None, :, None, None]
    mean = y.mean(axis=(0, 2, 3))
    var = y.var(axis=(0, 2, 3))
    yn = (y - mean[None, :, None, None]) * jax.lax.rsqrt(var + eps)[None, :, None, None]
    yn = yn * gamma[None, :, None, None] + beta[None, :, None, None]
    return jnp.maximum(yn, 0.0)


if __name__ == "__main__":
    # conv2DBatchNormRelu(in_channels=4, n_filters=8, k_size=3, stride=1, padding=1)
    N, Cin, H, W = 2, 4, 16, 16
    Cout, K, STRIDE, PAD, DIL = 8, 3, 1, 1, 1
    EPS = 1e-5

    key = jax.random.PRNGKey(0)
    kx, kw_, kb, kg, kbt = jax.random.split(key, 5)
    x = jax.random.normal(kx, (N, Cin, H, W), dtype=jnp.float32)
    weight = 0.1 * jax.random.normal(kw_, (Cout, Cin, K, K), dtype=jnp.float32)
    bias = 0.1 * jax.random.normal(kb, (Cout,), dtype=jnp.float32)
    gamma = 1.0 + 0.1 * jax.random.normal(kg, (Cout,), dtype=jnp.float32)
    beta = 0.1 * jax.random.normal(kbt, (Cout,), dtype=jnp.float32)

    out = conv2d_batchnorm_relu(x, weight, bias, gamma, beta,
                                stride=STRIDE, padding=PAD, dilation=DIL, eps=EPS)
    out = jax.block_until_ready(out)

    ref = _reference(x, weight, bias, gamma, beta,
                     stride=STRIDE, padding=PAD, dilation=DIL, eps=EPS)
    # bf16 MXU inputs (f32 accumulate) -> tolerance widened vs an all-f32 run.
    np.testing.assert_allclose(np.asarray(out), np.asarray(ref),
                               atol=2e-2, rtol=2e-2)

    print("KERNEL_OK")
</pallas_src>

<mosaic_0001>
module attributes {stable_mosaic.version = 11 : i64} {
  func.func @_conv_stats_kernel(%arg0: i32, %arg1: i32, %arg2: memref<1x4x326xbf16, #tpu.memory_space<vmem>>, %arg3: memref<9x8x4xbf16, #tpu.memory_space<vmem>>, %arg4: memref<1x1x288xf32, #tpu.memory_space<vmem>>, %arg5: memref<1x8x288xf32, #tpu.memory_space<vmem>>, %arg6: memref<1x8x1xf32, #tpu.memory_space<vmem>>, %arg7: memref<1x8x1xf32, #tpu.memory_space<vmem>>) attributes {dimension_semantics = [#tpu.dimension_semantics<parallel>, #tpu.dimension_semantics<parallel>], iteration_bounds = array<i64: 2, 1>, scalar_prefetch = 0 : i64, scratch_operands = 0 : i64, tpu.core_type = #tpu.core_type<tc>, window_params = [{transform_indices = @transform_0, window_bounds = array<i64: 1, 4, 326>}, {pipeline_mode = #tpu.pipeline_mode<synchronous>, transform_indices = @transform_1, window_bounds = array<i64: 9, 8, 4>}, {transform_indices = @transform_2, window_bounds = array<i64: 1, 1, 288>}, {transform_indices = @transform_3, window_bounds = array<i64: 1, 8, 288>}, {transform_indices = @transform_4, window_bounds = array<i64: 1, 8, 1>}, {transform_indices = @transform_5, window_bounds = array<i64: 1, 8, 1>}]} {
    %c0 = arith.constant 0 : index
    %c0_0 = arith.constant 0 : index
    %c0_1 = arith.constant 0 : index
    %0 = vector.load %arg2[%c0, %c0_0, %c0_1] : memref<1x4x326xbf16, #tpu.memory_space<vmem>>, vector<1x4x288xbf16>
    %1 = vector.shape_cast %0 : vector<1x4x288xbf16> to vector<4x288xbf16>
    %c0_2 = arith.constant 0 : index
    %c0_3 = arith.constant 0 : index
    %c0_4 = arith.constant 0 : index
    %2 = vector.load %arg3[%c0_2, %c0_3, %c0_4] : memref<9x8x4xbf16, #tpu.memory_space<vmem>>, vector<1x8x4xbf16>
    %3 = vector.shape_cast %2 : vector<1x8x4xbf16> to vector<8x4xbf16>
    %cst = arith.constant dense<0.000000e+00> : vector<8x288xf32>
    %4 = tpu.matmul %3, %1, %cst {dimension_numbers = #tpu.dot_dimension_numbers<[1], [0], [0], [1], [0, 0, 1, 1], [], []>} : vector<8x4xbf16>, vector<4x288xbf16>, vector<8x288xf32> -> vector<8x288xf32>
    %c0_5 = arith.constant 0 : index
    %c0_6 = arith.constant 0 : index
    %c1 = arith.constant 1 : index
    %5 = vector.load %arg2[%c0_5, %c0_6, %c1] : memref<1x4x326xbf16, #tpu.memory_space<vmem>>, vector<1x4x288xbf16>
    %6 = vector.shape_cast %5 : vector<1x4x288xbf16> to vector<4x288xbf16>
    %c1_7 = arith.constant 1 : index
    %c0_8 = arith.constant 0 : index
    %c0_9 = arith.constant 0 : index
    %7 = vector.load %arg3[%c1_7, %c0_8, %c0_9] : memref<9x8x4xbf16, #tpu.memory_space<vmem>>, vector<1x8x4xbf16>
    %8 = vector.shape_cast %7 : vector<1x8x4xbf16> to vector<8x4xbf16>
    %cst_10 = arith.constant dense<0.000000e+00> : vector<8x288xf32>
    %9 = tpu.matmul %8, %6, %cst_10 {dimension_numbers = #tpu.dot_dimension_numbers<[1], [0], [0], [1], [0, 0, 1, 1], [], []>} : vector<8x4xbf16>, vector<4x288xbf16>, vector<8x288xf32> -> vector<8x288xf32>
    %10 = arith.addf %4, %9 : vector<8x288xf32>
    %c0_11 = arith.constant 0 : index
    %c0_12 = arith.constant 0 : index
    %c2 = arith.constant 2 : index
    %11 = vector.load %arg2[%c0_11, %c0_12, %c2] : memref<1x4x326xbf16, #tpu.memory_space<vmem>>, vector<1x4x288xbf16>
    %12 = vector.shape_cast %11 : vector<1x4x288xbf16> to vector<4x288xbf16>
    %c2_13 = arith.constant 2 : index
    %c0_14 = arith.constant 0 : index
    %c0_15 = arith.constant 0 : index
    %13 = vector.load %arg3[%c2_13, %c0_14, %c0_15] : memref<9x8x4xbf16, #tpu.memory_space<vmem>>, vector<1x8x4xbf16>
    %14 = vector.shape_cast %13 : vector<1x8x4xbf16> to vector<8x4xbf16>
    %cst_16 = arith.constant dense<0.000000e+00> : vector<8x288xf32>
    %15 = tpu.matmul %14, %12, %cst_16 {dimension_numbers = #tpu.dot_dimension_numbers<[1], [0], [0], [1], [0, 0, 1, 1], [], []>} : vector<8x4xbf16>, vector<4x288xbf16>, vector<8x288xf32> -> vector<8x288xf32>
    %16 = arith.addf %10, %15 : vector<8x288xf32>
    %c0_17 = arith.constant 0 : index
    %c0_18 = arith.constant 0 : index
    %c18 = arith.constant 18 : index
    %17 = vector.load %arg2[%c0_17, %c0_18, %c18] : memref<1x4x326xbf16, #tpu.memory_space<vmem>>, vector<1x4x288xbf16>
    %18 = vector.shape_cast %17 : vector<1x4x288xbf16> to vector<4x288xbf16>
    %c3 = arith.constant 3 : index
    %c0_19 = arith.constant 0 : index
    %c0_20 = arith.constant 0 : index
    %19 = vector.load %arg3[%c3, %c0_19, %c0_20] : memref<9x8x4xbf16, #tpu.memory_space<vmem>>, vector<1x8x4xbf16>
    %20 = vector.shape_cast %19 : vector<1x8x4xbf16> to vector<8x4xbf16>
    %cst_21 = arith.constant dense<0.000000e+00> : vector<8x288xf32>
    %21 = tpu.matmul %20, %18, %cst_21 {dimension_numbers = #tpu.dot_dimension_numbers<[1], [0], [0], [1], [0, 0, 1, 1], [], []>} : vector<8x4xbf16>, vector<4x288xbf16>, vector<8x288xf32> -> vector<8x288xf32>
    %22 = arith.addf %16, %21 : vector<8x288xf32>
    %c0_22 = arith.constant 0 : index
    %c0_23 = arith.constant 0 : index
    %c19 = arith.constant 19 : index
    %23 = vector.load %arg2[%c0_22, %c0_23, %c19] : memref<1x4x326xbf16, #tpu.memory_space<vmem>>, vector<1x4x288xbf16>
    %24 = vector.shape_cast %23 : vector<1x4x288xbf16> to vector<4x288xbf16>
    %c4 = arith.constant 4 : index
    %c0_24 = arith.constant 0 : index
    %c0_25 = arith.constant 0 : index
    %25 = vector.load %arg3[%c4, %c0_24, %c0_25] : memref<9x8x4xbf16, #tpu.memory_space<vmem>>, vector<1x8x4xbf16>
    %26 = vector.shape_cast %25 : vector<1x8x4xbf16> to vector<8x4xbf16>
    %cst_26 = arith.constant dense<0.000000e+00> : vector<8x288xf32>
    %27 = tpu.matmul %26, %24, %cst_26 {dimension_numbers = #tpu.dot_dimension_numbers<[1], [0], [0], [1], [0, 0, 1, 1], [], []>} : vector<8x4xbf16>, vector<4x288xbf16>, vector<8x288xf32> -> vector<8x288xf32>
    %28 = arith.addf %22, %27 : vector<8x288xf32>
    %c0_27 = arith.constant 0 : index
    %c0_28 = arith.constant 0 : index
    %c20 = arith.constant 20 : index
    %29 = vector.load %arg2[%c0_27, %c0_28, %c20] : memref<1x4x326xbf16, #tpu.memory_space<vmem>>, vector<1x4x288xbf16>
    %30 = vector.shape_cast %29 : vector<1x4x288xbf16> to vector<4x288xbf16>
    %c5 = arith.constant 5 : index
    %c0_29 = arith.constant 0 : index
    %c0_30 = arith.constant 0 : index
    %31 = vector.load %arg3[%c5, %c0_29, %c0_30] : memref<9x8x4xbf16, #tpu.memory_space<vmem>>, vector<1x8x4xbf16>
    %32 = vector.shape_cast %31 : vector<1x8x4xbf16> to vector<8x4xbf16>
    %cst_31 = arith.constant dense<0.000000e+00> : vector<8x288xf32>
    %33 = tpu.matmul %32, %30, %cst_31 {dimension_numbers = #tpu.dot_dimension_numbers<[1], [0], [0], [1], [0, 0, 1, 1], [], []>} : vector<8x4xbf16>, vector<4x288xbf16>, vector<8x288xf32> -> vector<8x288xf32>
    %34 = arith.addf %28, %33 : vector<8x288xf32>
    %c0_32 = arith.constant 0 : index
    %c0_33 = arith.constant 0 : index
    %c36 = arith.constant 36 : index
    %35 = vector.load %arg2[%c0_32, %c0_33, %c36] : memref<1x4x326xbf16, #tpu.memory_space<vmem>>, vector<1x4x288xbf16>
    %36 = vector.shape_cast %35 : vector<1x4x288xbf16> to vector<4x288xbf16>
    %c6 = arith.constant 6 : index
    %c0_34 = arith.constant 0 : index
    %c0_35 = arith.constant 0 : index
    %37 = vector.load %arg3[%c6, %c0_34, %c0_35] : memref<9x8x4xbf16, #tpu.memory_space<vmem>>, vector<1x8x4xbf16>
    %38 = vector.shape_cast %37 : vector<1x8x4xbf16> to vector<8x4xbf16>
    %cst_36 = arith.constant dense<0.000000e+00> : vector<8x288xf32>
    %39 = tpu.matmul %38, %36, %cst_36 {dimension_numbers = #tpu.dot_dimension_numbers<[1], [0], [0], [1], [0, 0, 1, 1], [], []>} : vector<8x4xbf16>, vector<4x288xbf16>, vector<8x288xf32> -> vector<8x288xf32>
    %40 = arith.addf %34, %39 : vector<8x288xf32>
    %c0_37 = arith.constant 0 : index
    %c0_38 = arith.constant 0 : index
    %c37 = arith.constant 37 : index
    %41 = vector.load %arg2[%c0_37, %c0_38, %c37] : memref<1x4x326xbf16, #tpu.memory_space<vmem>>, vector<1x4x288xbf16>
    %42 = vector.shape_cast %41 : vector<1x4x288xbf16> to vector<4x288xbf16>
    %c7 = arith.constant 7 : index
    %c0_39 = arith.constant 0 : index
    %c0_40 = arith.constant 0 : index
    %43 = vector.load %arg3[%c7, %c0_39, %c0_40] : memref<9x8x4xbf16, #tpu.memory_space<vmem>>, vector<1x8x4xbf16>
    %44 = vector.shape_cast %43 : vector<1x8x4xbf16> to vector<8x4xbf16>
    %cst_41 = arith.constant dense<0.000000e+00> : vector<8x288xf32>
    %45 = tpu.matmul %44, %42, %cst_41 {dimension_numbers = #tpu.dot_dimension_numbers<[1], [0], [0], [1], [0, 0, 1, 1], [], []>} : vector<8x4xbf16>, vector<4x288xbf16>, vector<8x288xf32> -> vector<8x288xf32>
    %46 = arith.addf %40, %45 : vector<8x288xf32>
    %c0_42 = arith.constant 0 : index
    %c0_43 = arith.constant 0 : index
    %c38 = arith.constant 38 : index
    %47 = vector.load %arg2[%c0_42, %c0_43, %c38] : memref<1x4x326xbf16, #tpu.memory_space<vmem>>, vector<1x4x288xbf16>
    %48 = vector.shape_cast %47 : vector<1x4x288xbf16> to vector<4x288xbf16>
    %c8 = arith.constant 8 : index
    %c0_44 = arith.constant 0 : index
    %c0_45 = arith.constant 0 : index
    %49 = vector.load %arg3[%c8, %c0_44, %c0_45] : memref<9x8x4xbf16, #tpu.memory_space<vmem>>, vector<1x8x4xbf16>
    %50 = vector.shape_cast %49 : vector<1x8x4xbf16> to vector<8x4xbf16>
    %cst_46 = arith.constant dense<0.000000e+00> : vector<8x288xf32>
    %51 = tpu.matmul %50, %48, %cst_46 {dimension_numbers = #tpu.dot_dimension_numbers<[1], [0], [0], [1], [0, 0, 1, 1], [], []>} : vector<8x4xbf16>, vector<4x288xbf16>, vector<8x288xf32> -> vector<8x288xf32>
    %52 = arith.addf %46, %51 : vector<8x288xf32>
    %c0_47 = arith.constant 0 : index
    %c0_48 = arith.constant 0 : index
    %c0_49 = arith.constant 0 : index
    %53 = vector.load %arg5[%c0_47, %c0_48, %c0_49] : memref<1x8x288xf32, #tpu.memory_space<vmem>>, vector<1x8x288xf32>
    %54 = vector.shape_cast %53 : vector<1x8x288xf32> to vector<8x288xf32>
    %55 = vector.shape_cast %52 : vector<8x288xf32> to vector<1x8x288xf32>
    tpu.vector_store %arg5[%c0_47, %c0_48, %c0_49], %55 {strides = array<i32>} : memref<1x8x288xf32, #tpu.memory_space<vmem>>, vector<1x8x288xf32>,
    %c0_50 = arith.constant 0 : index
    %c0_51 = arith.constant 0 : index
    %c0_52 = arith.constant 0 : index
    %56 = vector.load %arg4[%c0_50, %c0_51, %c0_52] : memref<1x1x288xf32, #tpu.memory_space<vmem>>, vector<1x1x288xf32>
    %57 = vector.shape_cast %56 : vector<1x1x288xf32> to vector<1x288xf32>
    %58 = vector.broadcast %57 : vector<1x288xf32> to vector<8x288xf32>
    %59 = arith.mulf %52, %58 : vector<8x288xf32>
    %cst_53 = arith.constant dense<0.000000e+00> : vector<8xf32>
    %60 = vector.multi_reduction <add>, %59, %cst_53 [1] : vector<8x288xf32> to vector<8xf32>
    %61 = vector.shape_cast %60 : vector<8xf32> to vector<8x1xf32>
    %c0_54 = arith.constant 0 : index
    %c0_55 = arith.constant 0 : index
    %c0_56 = arith.constant 0 : index
    %62 = vector.load %arg6[%c0_54, %c0_55, %c0_56] : memref<1x8x1xf32, #tpu.memory_space<vmem>>, vector<1x8x1xf32>
    %63 = vector.shape_cast %62 : vector<1x8x1xf32> to vector<8x1xf32>
    %64 = vector.shape_cast %61 : vector<8x1xf32> to vector<1x8x1xf32>
    tpu.vector_store %arg6[%c0_54, %c0_55, %c0_56], %64 {strides = array<i32>} : memref<1x8x1xf32, #tpu.memory_space<vmem>>, vector<1x8x1xf32>,
    %65 = arith.mulf %59, %52 : vector<8x288xf32>
    %cst_57 = arith.constant dense<0.000000e+00> : vector<8xf32>
    %66 = vector.multi_reduction <add>, %65, %cst_57 [1] : vector<8x288xf32> to vector<8xf32>
    %67 = vector.shape_cast %66 : vector<8xf32> to vector<8x1xf32>
    %c0_58 = arith.constant 0 : index
    %c0_59 = arith.constant 0 : index
    %c0_60 = arith.constant 0 : index
    %68 = vector.load %arg7[%c0_58, %c0_59, %c0_60] : memref<1x8x1xf32, #tpu.memory_space<vmem>>, vector<1x8x1xf32>
    %69 = vector.shape_cast %68 : vector<1x8x1xf32> to vector<8x1xf32>
    %70 = vector.shape_cast %67 : vector<8x1xf32> to vector<1x8x1xf32>
    tpu.vector_store %arg7[%c0_58, %c0_59, %c0_60], %70 {strides = array<i32>} : memref<1x8x1xf32, #tpu.memory_space<vmem>>, vector<1x8x1xf32>,
    return
  }
  func.func @transform_0(%arg0: i32, %arg1: i32) -> (i32, i32, i32) {
    %c1_i32 = arith.constant 1 : i32
    %0 = arith.muli %arg0, %c1_i32 : i32
    %1 = arith.addi %0, %arg1 : i32
    %c0_i32 = arith.constant 0 : i32
    %c0_i32_0 = arith.constant 0 : i32
    %c0_i32_1 = arith.constant 0 : i32
    return %1, %c0_i32, %c0_i32_0 : i32, i32, i32
  }
  func.func @transform_1(%arg0: i32, %arg1: i32) -> (i32, i32, i32) {
    %c0_i32 = arith.constant 0 : i32
    %c0_i32_0 = arith.constant 0 : i32
    %c0_i32_1 = arith.constant 0 : i32
    %c0_i32_2 = arith.constant 0 : i32
    return %c0_i32, %c0_i32_0, %c0_i32_1 : i32, i32, i32
  }
  func.func @transform_2(%arg0: i32, %arg1: i32) -> (i32, i32, i32) {
    %c0_i32 = arith.constant 0 : i32
    %c0_i32_0 = arith.constant 0 : i32
    %c0_i32_1 = arith.constant 0 : i32
    return %arg1, %c0_i32, %c0_i32_0 : i32, i32, i32
  }
  func.func @transform_3(%arg0: i32, %arg1: i32) -> (i32, i32, i32) {
    %c1_i32 = arith.constant 1 : i32
    %0 = arith.muli %arg0, %c1_i32 : i32
    %1 = arith.addi %0, %arg1 : i32
    %c0_i32 = arith.constant 0 : i32
    %c0_i32_0 = arith.constant 0 : i32
    %c0_i32_1 = arith.constant 0 : i32
    return %1, %c0_i32, %c0_i32_0 : i32, i32, i32
  }
  func.func @transform_4(%arg0: i32, %arg1: i32) -> (i32, i32, i32) {
    %c1_i32 = arith.constant 1 : i32
    %0 = arith.muli %arg0, %c1_i32 : i32
    %1 = arith.addi %0, %arg1 : i32
    %c0_i32 = arith.constant 0 : i32
    %c0_i32_0 = arith.constant 0 : i32
    %c0_i32_1 = arith.constant 0 : i32
    return %1, %c0_i32, %c0_i32_0 : i32, i32, i32
  }
  func.func @transform_5(%arg0: i32, %arg1: i32) -> (i32, i32, i32) {
    %c1_i32 = arith.constant 1 : i32
    %0 = arith.muli %arg0, %c1_i32 : i32
    %1 = arith.addi %0, %arg1 : i32
    %c0_i32 = arith.constant 0 : i32
    %c0_i32_0 = arith.constant 0 : i32
    %c0_i32_1 = arith.constant 0 : i32
    return %1, %c0_i32, %c0_i32_0 : i32, i32, i32
  }
}

</mosaic_0001>

<llo_original>
// kernel: tpu_custom_call.1
$region0: #{tpu_custom_call.1}
  #allocation0 [shape = 'u32[]', space=smem, size = 0x4, offset = 0x4, fixed_abs, tag = 'smem constant byte address 0x4 - core index']
  #allocation1 [shape = 'u32[72,128]{1,0:T(1,128)}', space=vmem, size = 0x9000, scoped, tag = 'internal scratch']
  %s0 = inlined_call_operand.vmem [shape: bf16[2,4,326], index: 0, kind: input, shape index: {}]
  %s1 = inlined_call_operand.vmem [shape: bf16[9,8,4], index: 1, kind: input, shape index: {}]
  %s2 = inlined_call_operand.vmem [shape: f32[1,1,288], index: 2, kind: input, shape index: {}]
  %s3 = inlined_call_operand.hbm [shape: f32[2,8,288], index: 3, kind: output, shape index: {0}]
  %s4 = inlined_call_operand.vmem [shape: f32[2,8,1], index: 4, kind: output, shape index: {1}]
  %s5 = inlined_call_operand.vmem [shape: f32[2,8,1], index: 5, kind: output, shape index: {2}]
  %6 = xla_tuple %s3, %s4, %s5
  %s7 = sld [smem:[#allocation0]]
  $region61: #{tpu_custom_call.1} parent=0
    _
  %s9 = ssub.s32 1, %s7
  %s10 = scalar_select 0, %s9, %s7
  $region1: #{tpu_custom_call.1} parent=0
    #allocation2 [shape = 'u8[24576]{0}', space=vmem, size = 0x6000, scoped, tag = 'output window, operand 0']
    #allocation3 [shape = 's32[2]{0}', space=sflag, size = 0x8, scoped, tag = 'scoped memory for tpu_custom_call.1']
    %11 = vsyncpa [#allocation3], 0
    %s12 = scalar_lea.sflag [#allocation3], 1
    %13 = vsyncpa %s12, 0
    loop: start=0, step=1, limit=4
    $region2: #{tpu_custom_call.1} parent=1 // loop_pre_header
      _
    $region3: #{tpu_custom_call.1} parent=1 // loop_header
      %s15 = sphi 0, %s19
      %p16 = scmp.ge.s32.totalorder %s15, 4
      %s22 = sphi 0, %s34
      %s23 = sphi 0, %s30
      %s24 = sphi 0, %s22
      %s25 = sphi 0, %s23
      %s26 = sphi 0, %s24
      %s27 = sphi 0, %s25
      %s39 = sphi 0, %s41
      %s42 = sphi 0, %s39
      %s43 = sphi 0, %s42
      %s59 = sphi 0, %s43
      %s63 = sphi 0, %s63
      %s65 = sphi 0, %s63
      %s66 = sphi 0, %s65
      %s80 = sphi 0, %s66
      %s86 = sphi 0, %s88
      %s89 = sphi 0, %s86
      %s90 = sphi 0, %s89
      %s106 = sphi 0, %s90
      %s114 = sphi 0, %s116
      %s117 = sphi 0, %s114
      %s118 = sphi 0, %s117
      %s134 = sphi 0, %s118
      %s142 = sphi 0, %s144
      %s145 = sphi 0, %s142
      %s146 = sphi 0, %s145
      %s162 = sphi 0, %s146
      %s170 = sphi 0, %s172
      %s173 = sphi 0, %s170
      %s174 = sphi 0, %s173
      %s190 = sphi 0, %s174
    $region4: #{tpu_custom_call.1} parent=1 // loop_header_branch
      %18 = sbr.rel (%p16) target = $region8
    $region5: #{tpu_custom_call.1} parent=1 // loop_body
      %s20 = ssub.s32 %s15, 1
      %s21 = ssub.s32 %s15, 2
      %s28 = sadd.s32 1, %s23
      %p29 = scmp.ge.s32.totalorder %s28, 1
      %s30 = scalar_select %p29, 0, %s28
      %s31 = sadd.s32 1, %s22
      %s32 = scalar_select %p29, %s31, %s22
      %p33 = scmp.ge.s32.totalorder %s32, 2
      %s34 = scalar_select %p33, 0, %s32
      %s35 = sadd.s32 %s22, %s23
      %s36 = sadd.s32 %s34, %s30
      %s37 = ssub.s32 %s35, %s36
      %p38 = scmp.eq.s32.totalorder %s37, 0
      %s40 = sadd.s32 %s39, 1
      %s41 = scalar_select %p38, %s39, %s40
      %p44 = pneg %p38
      %p45 = scmp.eq.s32.totalorder %s15, 1
      %p46 = por %p44, %p45
      %p47 = scmp.ne.s32.totalorder %s39, %s42
      %p48 = scmp.eq.s32.totalorder %s15, 0
      %p49 = por %p47, %p48
      %p50 = scmp.ne.s32.totalorder %s39, %s42
      %p51 = scmp.eq.s32.totalorder %s20, 1
      %p52 = por %p50, %p51
      %p53 = scmp.ne.s32.totalorder %s42, %s43
      %p54 = scmp.eq.s32.totalorder %s20, 0
      %p55 = por %p53, %p54
      %p56 = scmp.ne.s32.totalorder %s42, %s43
      %p57 = scmp.eq.s32.totalorder %s21, 1
      %p58 = por %p56, %p57
      %p60 = scmp.ne.s32.totalorder %s43, %s59
      %p61 = scmp.eq.s32.totalorder %s21, 0
      %p62 = por %p60, %p61
      %s64 = sadd.s32 %s63, 1
      %p67 = scmp.eq.s32.totalorder %s15, 1
      %p68 = scmp.ne.s32.totalorder %s63, %s65
      %p69 = scmp.eq.s32.totalorder %s15, 0
      %p70 = por %p68, %p69
      %p71 = scmp.ne.s32.totalorder %s63, %s65
      %p72 = scmp.eq.s32.totalorder %s20, 1
      %p73 = por %p71, %p72
      %p74 = scmp.ne.s32.totalorder %s65, %s66
      %p75 = scmp.eq.s32.totalorder %s20, 0
      %p76 = por %p74, %p75
      %p77 = scmp.ne.s32.totalorder %s65, %s66
      %p78 = scmp.eq.s32.totalorder %s21, 1
      %p79 = por %p77, %p78
      %p81 = scmp.ne.s32.totalorder %s66, %s80
      %p82 = scmp.eq.s32.totalorder %s21, 0
      %p83 = por %p81, %p82
      %s84 = ssub.s32 %s23, %s30
      %p85 = scmp.eq.s32.totalorder %s84, 0
      %s87 = sadd.s32 %s86, 1
      %s88 = scalar_select %p85, %s86, %s87
      %p91 = pneg %p85
      %p92 = scmp.eq.s32.totalorder %s15, 1
      %p93 = por %p91, %p92
      %p94 = scmp.ne.s32.totalorder %s86, %s89
      %p95 = scmp.eq.s32.totalorder %s15, 0
      %p96 = por %p94, %p95
      %p97 = scmp.ne.s32.totalorder %s86, %s89
      %p98 = scmp.eq.s32.totalorder %s20, 1
      %p99 = por %p97, %p98
      %p100 = scmp.ne.s32.totalorder %s89, %s90
      %p101 = scmp.eq.s32.totalorder %s20, 0
      %p102 = por %p100, %p101
      %p103 = scmp.ne.s32.totalorder %s89, %s90
      %p104 = scmp.eq.s32.totalorder %s21, 1
      %p105 = por %p103, %p104
      %p107 = scmp.ne.s32.totalorder %s90, %s106
      %p108 = scmp.eq.s32.totalorder %s21, 0
      %p109 = por %p107, %p108
      %s110 = sadd.s32 %s22, %s23
      %s111 = sadd.s32 %s34, %s30
      %s112 = ssub.s32 %s110, %s111
      %p113 = scmp.eq.s32.totalorder %s112, 0
      %s115 = sadd.s32 %s114, 1
      %s116 = scalar_select %p113, %s114, %s115
      %p119 = pneg %p113
      %p120 = scmp.eq.s32.totalorder %s15, 1
      %p121 = por %p119, %p120
      %p122 = scmp.ne.s32.totalorder %s114, %s117
      %p123 = scmp.eq.s32.totalorder %s15, 0
      %p124 = por %p122, %p123
      %p125 = scmp.ne.s32.totalorder %s114, %s117
      %p126 = scmp.eq.s32.totalorder %s20, 1
      %p127 = por %p125, %p126
      %p128 = scmp.ne.s32.totalorder %s117, %s118
      %p129 = scmp.eq.s32.totalorder %s20, 0
      %p130 = por %p128, %p129
      %p131 = scmp.ne.s32.totalorder %s117, %s118
      %p132 = scmp.eq.s32.totalorder %s21, 1
      %p133 = por %p131, %p132
      %p135 = scmp.ne.s32.totalorder %s118, %s134
      %p136 = scmp.eq.s32.totalorder %s21, 0
      %p137 = por %p135, %p136
      %s138 = sadd.s32 %s22, %s23
      %s139 = sadd.s32 %s34, %s30
      %s140 = ssub.s32 %s138, %s139
      %p141 = scmp.eq.s32.totalorder %s140, 0
      %s143 = sadd.s32 %s142, 1
      %s144 = scalar_select %p141, %s142, %s143
      %p147 = pneg %p141
      %p148 = scmp.eq.s32.totalorder %s15, 1
      %p149 = por %p147, %p148
      %p150 = scmp.ne.s32.totalorder %s142, %s145
      %p151 = scmp.eq.s32.totalorder %s15, 0
      %p152 = por %p150, %p151
      %p153 = scmp.ne.s32.totalorder %s142, %s145
      %p154 = scmp.eq.s32.totalorder %s20, 1
      %p155 = por %p153, %p154
      %p156 = scmp.ne.s32.totalorder %s145, %s146
      %p157 = scmp.eq.s32.totalorder %s20, 0
      %p158 = por %p156, %p157
      %p159 = scmp.ne.s32.totalorder %s145, %s146
      %p160 = scmp.eq.s32.totalorder %s21, 1
      %p161 = por %p159, %p160
      %p163 = scmp.ne.s32.totalorder %s146, %s162
      %p164 = scmp.eq.s32.totalorder %s21, 0
      %p165 = por %p163, %p164
      %s166 = sadd.s32 %s22, %s23
      %s167 = sadd.s32 %s34, %s30
      %s168 = ssub.s32 %s166, %s167
      %p169 = scmp.eq.s32.totalorder %s168, 0
      %s171 = sadd.s32 %s170, 1
      %s172 = scalar_select %p169, %s170, %s171
      %p175 = pneg %p169
      %p176 = scmp.eq.s32.totalorder %s15, 1
      %p177 = por %p175, %p176
      %p178 = scmp.ne.s32.totalorder %s170, %s173
      %p179 = scmp.eq.s32.totalorder %s15, 0
      %p180 = por %p178, %p179
      %p181 = scmp.ne.s32.totalorder %s170, %s173
      %p182 = scmp.eq.s32.totalorder %s20, 1
      %p183 = por %p181, %p182
      %p184 = scmp.ne.s32.totalorder %s173, %s174
      %p185 = scmp.eq.s32.totalorder %s20, 0
      %p186 = por %p184, %p185
      %p187 = scmp.ne.s32.totalorder %s173, %s174
      %p188 = scmp.eq.s32.totalorder %s21, 1
      %p189 = por %p187, %p188
      %p191 = scmp.ne.s32.totalorder %s174, %s190
      %p192 = scmp.eq.s32.totalorder %s21, 0
      %p193 = por %p191, %p192
      %p194 = scmp.le.s32.totalorder 1, %s15
      %p195 = scmp.lt.s32.totalorder %s15, 3
      %p196 = pnand %p194, %p195
      %p197 = pneg %p196
      // Predicated region
      $region9: #{tpu_custom_call.1} parent=5 // pred_check
        _
      $region10: #{tpu_custom_call.1} parent=5 // pred_check_branch
        %199 = sbr.rel (%p196) target = $region12
      $region11: #{tpu_custom_call.1} parent=5 // pred_region
        %s200 = ssub.s32 %s15, 1
        // Predicated region
        $region13: #{tpu_custom_call.1} parent=11 // pred_check
          %p201 = pneg %p76
        $region14: #{tpu_custom_call.1} parent=11 // pred_check_branch
          %203 = sbr.rel (%p201) target = $region16
        $region15: #{tpu_custom_call.1} parent=11 // pred_region
          _
        $region16: #{tpu_custom_call.1} parent=11 // pred_fallthru
          _
        // Predicated region
        $region17: #{tpu_custom_call.1} parent=11 // pred_check
          %p204 = pneg %p102
        $region18: #{tpu_custom_call.1} parent=11 // pred_check_branch
          %206 = sbr.rel (%p204) target = $region20
        $region19: #{tpu_custom_call.1} parent=11 // pred_region
          %p207 = scmp.lt.s32.totalorder %s25, 0
          %s208 = scalar_select %p207, %s25, 0
          %s209 = smul.addr %s208, 3
          %s210 = scalar_lea.vmem %s2, %s209
        $region20: #{tpu_custom_call.1} parent=11 // pred_fallthru
          _
      $region12: #{tpu_custom_call.1} parent=5 // pred_fallthru
        _
      %p211 = scmp.lt.s32.totalorder %s15, 2
      // Predicated region
      $region21: #{tpu_custom_call.1} parent=5 // pred_check
        %p212 = pneg %p211
      $region22: #{tpu_custom_call.1} parent=5 // pred_check_branch
        %214 = sbr.rel (%p212) target = $region24
      $region23: #{tpu_custom_call.1} parent=5 // pred_region
        // Predicated region
        $region25: #{tpu_custom_call.1} parent=23 // pred_check
          %p215 = pneg %p49
        $region26: #{tpu_custom_call.1} parent=23 // pred_check_branch
          %217 = sbr.rel (%p215) target = $region28
        $region27: #{tpu_custom_call.1} parent=23 // pred_region
          %s218 = sadd.s32 %s22, %s23
          %p219 = scmp.lt.s32.totalorder %s218, 1
          %s220 = scalar_select %p219, %s218, 1
          %s221 = smul.addr %s220, 3
          %s222 = smul.addr %s221, 2
          %s223 = scalar_lea.vmem %s0, %s222
          %s224 = sadd.s32 %s22, %s23
        $region28: #{tpu_custom_call.1} parent=23 // pred_fallthru
          _
      $region24: #{tpu_custom_call.1} parent=5 // pred_fallthru
        _
      %p225 = scmp.le.s32.totalorder 1, %s15
      %p226 = scmp.lt.s32.totalorder %s15, 3
      %p227 = pnand %p225, %p226
      %p228 = pneg %p227
      // Predicated region
      $region29: #{tpu_custom_call.1} parent=5 // pred_check
        _
      $region30: #{tpu_custom_call.1} parent=5 // pred_check_branch
        %230 = sbr.rel (%p227) target = $region32
      $region31: #{tpu_custom_call.1} parent=5 // pred_region
        %s231 = ssub.s32 %s15, 1
        %s232 = sadd.s32 %s24, %s25
        %p233 = scmp.lt.s32.totalorder %s232, 1
        %s234 = scalar_select %p233, %s232, 1
        %s235 = smul.addr %s234, 3
        %s236 = smul.addr %s235, 2
        %s237 = scalar_lea.vmem %s0, %s236
        %p238 = pneg %p55
        %p239 = pneg %p52
        %p240 = pneg %p76
        %p241 = pneg %p73
        %p242 = scmp.lt.s32.totalorder %s25, 0
        %s243 = scalar_select %p242, %s25, 0
        %s244 = smul.addr %s243, 3
        %s245 = scalar_lea.vmem %s2, %s244
        %p246 = pneg %p102
        %p247 = pneg %p99
        %p248 = pneg %p130
        %p249 = pneg %p127
        %s250 = sand.u32 %s117, 1
        %s251 = scalar_lea.sflag [#allocation3], %s250
        %s252 = sand.u32 %s117, 1
        %s253 = smul.addr %s252, 24
        %s254 = scalar_lea.vmem [#allocation2], %s253
        %p255 = pneg %p158
        %p256 = pneg %p155
        %s257 = sadd.s32 %s24, %s25
        %p258 = scmp.lt.s32.totalorder %s257, 1
        %s259 = scalar_select %p258, %s257, 1
        %s260 = smul.addr %s259, 8
        %s261 = scalar_lea.vmem %s4, %s260
        %p262 = pneg %p186
        %p263 = pneg %p183
        %s264 = sadd.s32 %s24, %s25
        %p265 = scmp.lt.s32.totalorder %s264, 1
        %s266 = scalar_select %p265, %s264, 1
        %s267 = smul.addr %s266, 8
        %s268 = scalar_lea.vmem %s5, %s267
        %s269 = sadd.s32 %s24, %s25
        %p270 = scmp.lt.s32.totalorder %s269, 1
        %s271 = scalar_select %p270, %s269, 1
        %s272 = smul.addr %s271, 3
        %s273 = smul.addr %s272, 2
        %s274 = scalar_lea.vmem %s0, %s273
        %s275 = sadd.s32 %s24, %s25
        %p276 = scmp.lt.s32.totalorder %s25, 0
        %s277 = scalar_select %p276, %s25, 0
        %s278 = smul.addr %s277, 3
        %s279 = scalar_lea.vmem %s2, %s278
        %s280 = sadd.s32 %s24, %s25
        %s281 = sadd.s32 %s24, %s25
        %p282 = scmp.lt.s32.totalorder %s281, 1
        %s283 = scalar_select %p282, %s281, 1
        %s284 = smul.addr %s283, 8
        %s285 = scalar_lea.vmem %s4, %s284
        %s286 = sadd.s32 %s24, %s25
        %s287 = sadd.s32 %s24, %s25
        %p288 = scmp.lt.s32.totalorder %s287, 1
        %s289 = scalar_select %p288, %s287, 1
        %s290 = smul.addr %s289, 8
        %s291 = scalar_lea.vmem %s5, %s290
        %s292 = sadd.s32 %s24, %s25
        %v294 = vld [vmem:[%s274] sm:$0x3f]
        %v295 = vld [vmem:[%s1] sm:$0xf]
        %s296 = scalar_lea.vmem %s1, 4
        %v297 = vld [vmem:[%s296] sm:$0xf]
        %299 = vst [vmem:[#allocation1] ss:$4 sm:$0xff] %v294
        %v300 = vld.sshfl [vmem:[#allocation1] sm:$0xff pattern:$0x73625140]
        %v302 = vld.sshfl [vmem:[#allocation1 + $0x8] sm:$0xff pattern:$0x73625140]
        %v304 = vld.sshfl [vmem:[#allocation1 + $0x10] sm:$0xff pattern:$0x73625140]
        %306 = vrot.lane.b32.xlu0 %v300, 127
        %v307 = vpop.permute.xlu0 %306
        %308 = vrot.lane.b32.xlu0 %v302, 127
        %v309 = vpop.permute.xlu0 %308
        %310 = vrot.lane.b32.xlu0 %v304, 127
        %v311 = vpop.permute.xlu0 %310
        %vm312 = vcmask 1039360
        %v313 = vsel %vm312, %v307, %v309
        %v314 = vsel %vm312, %v309, %v311
        %vm315 = vcmask 31744
        %v317 = vsel %vm315, %v297, 0
        %vm319 = vcmask 1041408
        %v321 = vsel %vm319, %v313, 0
        %v324 = vsel %vm319, %v314, 0
        %v327 = vsel %vm319, %v311, 0
        %329 = vmatpush.bf16.msra.mxu0 0
        %330 = vmatpush.bf16.msra.mxu0 0
        %331 = vmatpush.bf16.msra.mxu0 0
        %332 = vmatpush.bf16.msra.mxu0 0
        %333 = vmatpush.bf16.msra.mxu0 0
        %334 = vmatpush.bf16.msra.mxu0 0
        %335 = vmatpush.bf16.msra.mxu0 0
        %336 = vmatpush.bf16.msra.mxu0 %v321
        %337 = vmatmul.bf16.gmra.mxu0 %v317
        %v338 = vpop.f32.mrf.mxu0
        %v339 = vadd.f32 0.0, %v338
        %v340 = vpop.f32.mrf.mxu0
        %341 = vdwg.mxu0
        %342 = vmatpush.bf16.msra.mxu0 0
        %343 = vmatpush.bf16.msra.mxu0 0
        %344 = vmatpush.bf16.msra.mxu0 0
        %345 = vmatpush.bf16.msra.mxu0 0
        %346 = vmatpush.bf16.msra.mxu0 0
        %347 = vmatpush.bf16.msra.mxu0 0
        %348 = vmatpush.bf16.msra.mxu0 0
        %349 = vmatpush.bf16.msra.mxu0 %v324
        %350 = vmatmul.bf16.gmra.mxu0 %v317
        %v351 = vpop.f32.mrf.mxu0
        %v352 = vadd.f32 0.0, %v351
        %v353 = vpop.f32.mrf.mxu0
        %354 = vdwg.mxu0
        %355 = vmatpush.bf16.msra.mxu0 0
        %356 = vmatpush.bf16.msra.mxu0 0
        %357 = vmatpush.bf16.msra.mxu0 0
        %358 = vmatpush.bf16.msra.mxu0 0
        %359 = vmatpush.bf16.msra.mxu0 0
        %360 = vmatpush.bf16.msra.mxu0 0
        %361 = vmatpush.bf16.msra.mxu0 0
        %362 = vmatpush.bf16.msra.mxu0 %v327
        %363 = vmatmul.bf16.gmra.mxu0 %v317
        %v364 = vpop.f32.mrf.mxu0
        %v365 = vadd.f32 0.0, %v364
        %v366 = vpop.f32.mrf.mxu0
        %367 = vdwg.mxu0
        %368 = vst [vmem:[#allocation1] ss:$4 sm:$0xff] %v294
        %v369 = vld.sshfl [vmem:[#allocation1] sm:$0xff pattern:$0x73625140]
        %v370 = vld.sshfl [vmem:[#allocation1 + $0x8] sm:$0xff pattern:$0x73625140]
        %v371 = vld.sshfl [vmem:[#allocation1 + $0x10] sm:$0xff pattern:$0x73625140]
        %v373 = vsel %vm315, %v295, 0
        %v375 = vsel %vm319, %v369, 0
        %v377 = vsel %vm319, %v370, 0
        %v379 = vsel %vm319, %v371, 0
        %381 = vmatpush.bf16.msra.mxu0 0
        %382 = vmatpush.bf16.msra.mxu0 0
        %383 = vmatpush.bf16.msra.mxu0 0
        %384 = vmatpush.bf16.msra.mxu0 0
        %385 = vmatpush.bf16.msra.mxu0 0
        %386 = vmatpush.bf16.msra.mxu0 0
        %387 = vmatpush.bf16.msra.mxu0 0
        %388 = vmatpush.bf16.msra.mxu0 %v375
        %389 = vmatmul.bf16.gmra.mxu0 %v373
        %v390 = vpop.f32.mrf.mxu0
        %v391 = vadd.f32 %v339, %v390
        %v392 = vpop.f32.mrf.mxu0
        %393 = vdwg.mxu0
        %394 = vmatpush.bf16.msra.mxu0 0
        %395 = vmatpush.bf16.msra.mxu0 0
        %396 = vmatpush.bf16.msra.mxu0 0
        %397 = vmatpush.bf16.msra.mxu0 0
        %398 = vmatpush.bf16.msra.mxu0 0
        %399 = vmatpush.bf16.msra.mxu0 0
        %400 = vmatpush.bf16.msra.mxu0 0
        %401 = vmatpush.bf16.msra.mxu0 %v377
        %402 = vmatmul.bf16.gmra.mxu0 %v373
        %v403 = vpop.f32.mrf.mxu0
        %v404 = vadd.f32 %v352, %v403
        %v405 = vpop.f32.mrf.mxu0
        %406 = vdwg.mxu0
        %407 = vmatpush.bf16.msra.mxu0 0
        %408 = vmatpush.bf16.msra.mxu0 0
        %409 = vmatpush.bf16.msra.mxu0 0
        %410 = vmatpush.bf16.msra.mxu0 0
        %411 = vmatpush.bf16.msra.mxu0 0
        %412 = vmatpush.bf16.msra.mxu0 0
        %413 = vmatpush.bf16.msra.mxu0 0
        %414 = vmatpush.bf16.msra.mxu0 %v379
        %415 = vmatmul.bf16.gmra.mxu0 %v373
        %v416 = vpop.f32.mrf.mxu0
        %v417 = vadd.f32 %v365, %v416
        %v418 = vpop.f32.mrf.mxu0
        %419 = vdwg.mxu0
        %v420 = vld [vmem:[%s274] sm:$0x3f]
        %s421 = scalar_lea.vmem %s1, 8
        %v422 = vld [vmem:[%s421] sm:$0xf]
        %424 = vst [vmem:[#allocation1] ss:$4 sm:$0xff] %v420
        %v425 = vld.sshfl [vmem:[#allocation1] sm:$0xff pattern:$0x73625140]
        %v427 = vld.sshfl [vmem:[#allocation1 + $0x8] sm:$0xff pattern:$0x73625140]
        %v429 = vld.sshfl [vmem:[#allocation1 + $0x10] sm:$0xff pattern:$0x73625140]
        %431 = vrot.lane.b32.xlu0 %v425, 126
        %v432 = vpop.permute.xlu0 %431
        %433 = vrot.lane.b32.xlu0 %v427, 126
        %v434 = vpop.permute.xlu0 %433
        %435 = vrot.lane.b32.xlu0 %v429, 126
        %v436 = vpop.permute.xlu0 %435
        %vm437 = vcmask 1031168
        %v438 = vsel %vm437, %v432, %v434
        %v439 = vsel %vm437, %v434, %v436
        %v441 = vsel %vm315, %v422, 0
        %v444 = vsel %vm319, %v438, 0
        %v447 = vsel %vm319, %v439, 0
        %v450 = vsel %vm319, %v436, 0
        %452 = vmatpush.bf16.msra.mxu0 0
        %453 = vmatpush.bf16.msra.mxu0 0
        %454 = vmatpush.bf16.msra.mxu0 0
        %455 = vmatpush.bf16.msra.mxu0 0
        %456 = vmatpush.bf16.msra.mxu0 0
        %457 = vmatpush.bf16.msra.mxu0 0
        %458 = vmatpush.bf16.msra.mxu0 0
        %459 = vmatpush.bf16.msra.mxu0 %v444
        %460 = vmatmul.bf16.gmra.mxu0 %v441
        %v461 = vpop.f32.mrf.mxu0
        %v462 = vadd.f32 0.0, %v461
        %v463 = vpop.f32.mrf.mxu0
        %464 = vdwg.mxu0
        %465 = vmatpush.bf16.msra.mxu0 0
        %466 = vmatpush.bf16.msra.mxu0 0
        %467 = vmatpush.bf16.msra.mxu0 0
        %468 = vmatpush.bf16.msra.mxu0 0
        %469 = vmatpush.bf16.msra.mxu0 0
        %470 = vmatpush.bf16.msra.mxu0 0
        %471 = vmatpush.bf16.msra.mxu0 0
        %472 = vmatpush.bf16.msra.mxu0 %v447
        %473 = vmatmul.bf16.gmra.mxu0 %v441
        %v474 = vpop.f32.mrf.mxu0
        %v475 = vadd.f32 0.0, %v474
        %v476 = vpop.f32.mrf.mxu0
        %477 = vdwg.mxu0
        %478 = vmatpush.bf16.msra.mxu0 0
        %479 = vmatpush.bf16.msra.mxu0 0
        %480 = vmatpush.bf16.msra.mxu0 0
        %481 = vmatpush.bf16.msra.mxu0 0
        %482 = vmatpush.bf16.msra.mxu0 0
        %483 = vmatpush.bf16.msra.mxu0 0
        %484 = vmatpush.bf16.msra.mxu0 0
        %485 = vmatpush.bf16.msra.mxu0 %v450
        %486 = vmatmul.bf16.gmra.mxu0 %v441
        %v487 = vpop.f32.mrf.mxu0
        %v488 = vadd.f32 0.0, %v487
        %v489 = vpop.f32.mrf.mxu0
        %490 = vdwg.mxu0
        %v491 = vadd.f32 %v391, %v462
        %v492 = vadd.f32 %v404, %v475
        %v493 = vadd.f32 %v417, %v488
        %v494 = vld [vmem:[%s274] sm:$0x3f]
        %s495 = scalar_lea.vmem %s1, 12
        %v496 = vld [vmem:[%s495] sm:$0xf]
        %498 = vst [vmem:[#allocation1] ss:$4 sm:$0xff] %v494
        %v499 = vld.sshfl [vmem:[#allocation1] sm:$0xff pattern:$0x73625140]
        %v501 = vld.sshfl [vmem:[#allocation1 + $0x8] sm:$0xff pattern:$0x73625140]
        %v503 = vld.sshfl [vmem:[#allocation1 + $0x10] sm:$0xff pattern:$0x73625140]
        %505 = vrot.lane.b32.xlu0 %v499, 110
        %v506 = vpop.permute.xlu0 %505
        %507 = vrot.lane.b32.xlu0 %v501, 110
        %v508 = vpop.permute.xlu0 %507
        %509 = vrot.lane.b32.xlu0 %v503, 110
        %v510 = vpop.permute.xlu0 %509
        %vm511 = vcmask 900096
        %v512 = vsel %vm511, %v506, %v508
        %v513 = vsel %vm511, %v508, %v510
        %v515 = vsel %vm315, %v496, 0
        %v518 = vsel %vm319, %v512, 0
        %v521 = vsel %vm319, %v513, 0
        %v524 = vsel %vm319, %v510, 0
        %526 = vmatpush.bf16.msra.mxu0 0
        %527 = vmatpush.bf16.msra.mxu0 0
        %528 = vmatpush.bf16.msra.mxu0 0
        %529 = vmatpush.bf16.msra.mxu0 0
        %530 = vmatpush.bf16.msra.mxu0 0
        %531 = vmatpush.bf16.msra.mxu0 0
        %532 = vmatpush.bf16.msra.mxu0 0
        %533 = vmatpush.bf16.msra.mxu0 %v518
        %534 = vmatmul.bf16.gmra.mxu0 %v515
        %v535 = vpop.f32.mrf.mxu0
        %v536 = vadd.f32 0.0, %v535
        %v537 = vpop.f32.mrf.mxu0
        %538 = vdwg.mxu0
        %539 = vmatpush.bf16.msra.mxu0 0
        %540 = vmatpush.bf16.msra.mxu0 0
        %541 = vmatpush.bf16.msra.mxu0 0
        %542 = vmatpush.bf16.msra.mxu0 0
        %543 = vmatpush.bf16.msra.mxu0 0
        %544 = vmatpush.bf16.msra.mxu0 0
        %545 = vmatpush.bf16.msra.mxu0 0
        %546 = vmatpush.bf16.msra.mxu0 %v521
        %547 = vmatmul.bf16.gmra.mxu0 %v515
        %v548 = vpop.f32.mrf.mxu0
        %v549 = vadd.f32 0.0, %v548
        %v550 = vpop.f32.mrf.mxu0
        %551 = vdwg.mxu0
        %552 = vmatpush.bf16.msra.mxu0 0
        %553 = vmatpush.bf16.msra.mxu0 0
        %554 = vmatpush.bf16.msra.mxu0 0
        %555 = vmatpush.bf16.msra.mxu0 0
        %556 = vmatpush.bf16.msra.mxu0 0
        %557 = vmatpush.bf16.msra.mxu0 0
        %558 = vmatpush.bf16.msra.mxu0 0
        %559 = vmatpush.bf16.msra.mxu0 %v524
        %560 = vmatmul.bf16.gmra.mxu0 %v515
        %v561 = vpop.f32.mrf.mxu0
        %v562 = vadd.f32 0.0, %v561
        %v563 = vpop.f32.mrf.mxu0
        %564 = vdwg.mxu0
        %v565 = vadd.f32 %v491, %v536
        %v566 = vadd.f32 %v492, %v549
        %v567 = vadd.f32 %v493, %v562
        %v568 = vld [vmem:[%s274] sm:$0x3f]
        %s569 = scalar_lea.vmem %s1, 16
        %v570 = vld [vmem:[%s569] sm:$0xf]
        %572 = vst [vmem:[#allocation1] ss:$4 sm:$0xff] %v568
        %v573 = vld.sshfl [vmem:[#allocation1] sm:$0xff pattern:$0x73625140]
        %v575 = vld.sshfl [vmem:[#allocation1 + $0x8] sm:$0xff pattern:$0x73625140]
        %v577 = vld.sshfl [vmem:[#allocation1 + $0x10] sm:$0xff pattern:$0x73625140]
        %579 = vrot.lane.b32.xlu0 %v573, 109
        %v580 = vpop.permute.xlu0 %579
        %581 = vrot.lane.b32.xlu0 %v575, 109
        %v582 = vpop.permute.xlu0 %581
        %583 = vrot.lane.b32.xlu0 %v577, 109
        %v584 = vpop.permute.xlu0 %583
        %vm585 = vcmask 891904
        %v586 = vsel %vm585, %v580, %v582
        %v587 = vsel %vm585, %v582, %v584
        %v589 = vsel %vm315, %v570, 0
        %v592 = vsel %vm319, %v586, 0
        %v595 = vsel %vm319, %v587, 0
        %v598 = vsel %vm319, %v584, 0
        %600 = vmatpush.bf16.msra.mxu0 0
        %601 = vmatpush.bf16.msra.mxu0 0
        %602 = vmatpush.bf16.msra.mxu0 0
        %603 = vmatpush.bf16.msra.mxu0 0
        %604 = vmatpush.bf16.msra.mxu0 0
        %605 = vmatpush.bf16.msra.mxu0 0
        %606 = vmatpush.bf16.msra.mxu0 0
        %607 = vmatpush.bf16.msra.mxu0 %v592
        %608 = vmatmul.bf16.gmra.mxu0 %v589
        %v609 = vpop.f32.mrf.mxu0
        %v610 = vadd.f32 0.0, %v609
        %v611 = vpop.f32.mrf.mxu0
        %612 = vdwg.mxu0
        %613 = vmatpush.bf16.msra.mxu0 0
        %614 = vmatpush.bf16.msra.mxu0 0
        %615 = vmatpush.bf16.msra.mxu0 0
        %616 = vmatpush.bf16.msra.mxu0 0
        %617 = vmatpush.bf16.msra.mxu0 0
        %618 = vmatpush.bf16.msra.mxu0 0
        %619 = vmatpush.bf16.msra.mxu0 0
        %620 = vmatpush.bf16.msra.mxu0 %v595
        %621 = vmatmul.bf16.gmra.mxu0 %v589
        %v622 = vpop.f32.mrf.mxu0
        %v623 = vadd.f32 0.0, %v622
        %v624 = vpop.f32.mrf.mxu0
        %625 = vdwg.mxu0
        %626 = vmatpush.bf16.msra.mxu0 0
        %627 = vmatpush.bf16.msra.mxu0 0
        %628 = vmatpush.bf16.msra.mxu0 0
        %629 = vmatpush.bf16.msra.mxu0 0
        %630 = vmatpush.bf16.msra.mxu0 0
        %631 = vmatpush.bf16.msra.mxu0 0
        %632 = vmatpush.bf16.msra.mxu0 0
        %633 = vmatpush.bf16.msra.mxu0 %v598
        %634 = vmatmul.bf16.gmra.mxu0 %v589
        %v635 = vpop.f32.mrf.mxu0
        %v636 = vadd.f32 0.0, %v635
        %v637 = vpop.f32.mrf.mxu0
        %638 = vdwg.mxu0
        %v639 = vadd.f32 %v565, %v610
        %v640 = vadd.f32 %v566, %v623
        %v641 = vadd.f32 %v567, %v636
        %v642 = vld [vmem:[%s274] sm:$0x3f]
        %s643 = scalar_lea.vmem %s1, 20
        %v644 = vld [vmem:[%s643] sm:$0xf]
        %646 = vst [vmem:[#allocation1] ss:$4 sm:$0xff] %v642
        %v647 = vld.sshfl [vmem:[#allocation1] sm:$0xff pattern:$0x73625140]
        %v649 = vld.sshfl [vmem:[#allocation1 + $0x8] sm:$0xff pattern:$0x73625140]
        %v651 = vld.sshfl [vmem:[#allocation1 + $0x10] sm:$0xff pattern:$0x73625140]
        %653 = vrot.lane.b32.xlu0 %v647, 108
        %v654 = vpop.permute.xlu0 %653
        %655 = vrot.lane.b32.xlu0 %v649, 108
        %v656 = vpop.permute.xlu0 %655
        %657 = vrot.lane.b32.xlu0 %v651, 108
        %v658 = vpop.permute.xlu0 %657
        %vm659 = vcmask 883712
        %v660 = vsel %vm659, %v654, %v656
        %v661 = vsel %vm659, %v656, %v658
        %v663 = vsel %vm315, %v644, 0
        %v666 = vsel %vm319, %v660, 0
        %v669 = vsel %vm319, %v661, 0
        %v672 = vsel %vm319, %v658, 0
        %674 = vmatpush.bf16.msra.mxu0 0
        %675 = vmatpush.bf16.msra.mxu0 0
        %676 = vmatpush.bf16.msra.mxu0 0
        %677 = vmatpush.bf16.msra.mxu0 0
        %678 = vmatpush.bf16.msra.mxu0 0
        %679 = vmatpush.bf16.msra.mxu0 0
        %680 = vmatpush.bf16.msra.mxu0 0
        %681 = vmatpush.bf16.msra.mxu0 %v666
        %682 = vmatmul.bf16.gmra.mxu0 %v663
        %v683 = vpop.f32.mrf.mxu0
        %v684 = vadd.f32 0.0, %v683
        %v685 = vpop.f32.mrf.mxu0
        %686 = vdwg.mxu0
        %687 = vmatpush.bf16.msra.mxu0 0
        %688 = vmatpush.bf16.msra.mxu0 0
        %689 = vmatpush.bf16.msra.mxu0 0
        %690 = vmatpush.bf16.msra.mxu0 0
        %691 = vmatpush.bf16.msra.mxu0 0
        %692 = vmatpush.bf16.msra.mxu0 0
        %693 = vmatpush.bf16.msra.mxu0 0
        %694 = vmatpush.bf16.msra.mxu0 %v669
        %695 = vmatmul.bf16.gmra.mxu0 %v663
        %v696 = vpop.f32.mrf.mxu0
        %v697 = vadd.f32 0.0, %v696
        %v698 = vpop.f32.mrf.mxu0
        %699 = vdwg.mxu0
        %700 = vmatpush.bf16.msra.mxu0 0
        %701 = vmatpush.bf16.msra.mxu0 0
        %702 = vmatpush.bf16.msra.mxu0 0
        %703 = vmatpush.bf16.msra.mxu0 0
        %704 = vmatpush.bf16.msra.mxu0 0
        %705 = vmatpush.bf16.msra.mxu0 0
        %706 = vmatpush.bf16.msra.mxu0 0
        %707 = vmatpush.bf16.msra.mxu0 %v672
        %708 = vmatmul.bf16.gmra.mxu0 %v663
        %v709 = vpop.f32.mrf.mxu0
        %v710 = vadd.f32 0.0, %v709
        %v711 = vpop.f32.mrf.mxu0
        %712 = vdwg.mxu0
        %v713 = vadd.f32 %v639, %v684
        %v714 = vadd.f32 %v640, %v697
        %v715 = vadd.f32 %v641, %v710
        %v716 = vld [vmem:[%s274] sm:$0x3f]
        %s717 = scalar_lea.vmem %s1, 24
        %v718 = vld [vmem:[%s717] sm:$0xf]
        %720 = vst [vmem:[#allocation1] ss:$4 sm:$0xff] %v716
        %v721 = vld.sshfl [vmem:[#allocation1] sm:$0xff pattern:$0x73625140]
        %v723 = vld.sshfl [vmem:[#allocation1 + $0x8] sm:$0xff pattern:$0x73625140]
        %v725 = vld.sshfl [vmem:[#allocation1 + $0x10] sm:$0xff pattern:$0x73625140]
        %727 = vrot.lane.b32.xlu0 %v721, 92
        %v728 = vpop.permute.xlu0 %727
        %729 = vrot.lane.b32.xlu0 %v723, 92
        %v730 = vpop.permute.xlu0 %729
        %731 = vrot.lane.b32.xlu0 %v725, 92
        %v732 = vpop.permute.xlu0 %731
        %vm733 = vcmask 752640
        %v734 = vsel %vm733, %v728, %v730
        %v735 = vsel %vm733, %v730, %v732
        %v737 = vsel %vm315, %v718, 0
        %v740 = vsel %vm319, %v734, 0
        %v743 = vsel %vm319, %v735, 0
        %v746 = vsel %vm319, %v732, 0
        %748 = vmatpush.bf16.msra.mxu0 0
        %749 = vmatpush.bf16.msra.mxu0 0
        %750 = vmatpush.bf16.msra.mxu0 0
        %751 = vmatpush.bf16.msra.mxu0 0
        %752 = vmatpush.bf16.msra.mxu0 0
        %753 = vmatpush.bf16.msra.mxu0 0
        %754 = vmatpush.bf16.msra.mxu0 0
        %755 = vmatpush.bf16.msra.mxu0 %v740
        %756 = vmatmul.bf16.gmra.mxu0 %v737
        %v757 = vpop.f32.mrf.mxu0
        %v758 = vadd.f32 0.0, %v757
        %v759 = vpop.f32.mrf.mxu0
        %760 = vdwg.mxu0
        %761 = vmatpush.bf16.msra.mxu0 0
        %762 = vmatpush.bf16.msra.mxu0 0
        %763 = vmatpush.bf16.msra.mxu0 0
        %764 = vmatpush.bf16.msra.mxu0 0
        %765 = vmatpush.bf16.msra.mxu0 0
        %766 = vmatpush.bf16.msra.mxu0 0
        %767 = vmatpush.bf16.msra.mxu0 0
        %768 = vmatpush.bf16.msra.mxu0 %v743
        %769 = vmatmul.bf16.gmra.mxu0 %v737
        %v770 = vpop.f32.mrf.mxu0
        %v771 = vadd.f32 0.0, %v770
        %v772 = vpop.f32.mrf.mxu0
        %773 = vdwg.mxu0
        %774 = vmatpush.bf16.msra.mxu0 0
        %775 = vmatpush.bf16.msra.mxu0 0
        %776 = vmatpush.bf16.msra.mxu0 0
        %777 = vmatpush.bf16.msra.mxu0 0
        %778 = vmatpush.bf16.msra.mxu0 0
        %779 = vmatpush.bf16.msra.mxu0 0
        %780 = vmatpush.bf16.msra.mxu0 0
        %781 = vmatpush.bf16.msra.mxu0 %v746
        %782 = vmatmul.bf16.gmra.mxu0 %v737
        %v783 = vpop.f32.mrf.mxu0
        %v784 = vadd.f32 0.0, %v783
        %v785 = vpop.f32.mrf.mxu0
        %786 = vdwg.mxu0
        %v787 = vadd.f32 %v713, %v758
        %v788 = vadd.f32 %v714, %v771
        %v789 = vadd.f32 %v715, %v784
        %v790 = vld [vmem:[%s274] sm:$0x3f]
        %s791 = scalar_lea.vmem %s1, 28
        %v792 = vld [vmem:[%s791] sm:$0xf]
        %794 = vst [vmem:[#allocation1] ss:$4 sm:$0xff] %v790
        %v795 = vld.sshfl [vmem:[#allocation1] sm:$0xff pattern:$0x73625140]
        %v797 = vld.sshfl [vmem:[#allocation1 + $0x8] sm:$0xff pattern:$0x73625140]
        %v799 = vld.sshfl [vmem:[#allocation1 + $0x10] sm:$0xff pattern:$0x73625140]
        %801 = vrot.lane.b32.xlu0 %v795, 91
        %v802 = vpop.permute.xlu0 %801
        %803 = vrot.lane.b32.xlu0 %v797, 91
        %v804 = vpop.permute.xlu0 %803
        %805 = vrot.lane.b32.xlu0 %v799, 91
        %v806 = vpop.permute.xlu0 %805
        %vm807 = vcmask 744448
        %v808 = vsel %vm807, %v802, %v804
        %v809 = vsel %vm807, %v804, %v806
        %v811 = vsel %vm315, %v792, 0
        %v814 = vsel %vm319, %v808, 0
        %v817 = vsel %vm319, %v809, 0
        %v820 = vsel %vm319, %v806, 0
        %822 = vmatpush.bf16.msra.mxu0 0
        %823 = vmatpush.bf16.msra.mxu0 0
        %824 = vmatpush.bf16.msra.mxu0 0
        %825 = vmatpush.bf16.msra.mxu0 0
        %826 = vmatpush.bf16.msra.mxu0 0
        %827 = vmatpush.bf16.msra.mxu0 0
        %828 = vmatpush.bf16.msra.mxu0 0
        %829 = vmatpush.bf16.msra.mxu0 %v814
        %830 = vmatmul.bf16.gmra.mxu0 %v811
        %v831 = vpop.f32.mrf.mxu0
        %v832 = vadd.f32 0.0, %v831
        %v833 = vpop.f32.mrf.mxu0
        %834 = vdwg.mxu0
        %835 = vmatpush.bf16.msra.mxu0 0
        %836 = vmatpush.bf16.msra.mxu0 0
        %837 = vmatpush.bf16.msra.mxu0 0
        %838 = vmatpush.bf16.msra.mxu0 0
        %839 = vmatpush.bf16.msra.mxu0 0
        %840 = vmatpush.bf16.msra.mxu0 0
        %841 = vmatpush.bf16.msra.mxu0 0
        %842 = vmatpush.bf16.msra.mxu0 %v817
        %843 = vmatmul.bf16.gmra.mxu0 %v811
        %v844 = vpop.f32.mrf.mxu0
        %v845 = vadd.f32 0.0, %v844
        %v846 = vpop.f32.mrf.mxu0
        %847 = vdwg.mxu0
        %848 = vmatpush.bf16.msra.mxu0 0
        %849 = vmatpush.bf16.msra.mxu0 0
        %850 = vmatpush.bf16.msra.mxu0 0
        %851 = vmatpush.bf16.msra.mxu0 0
        %852 = vmatpush.bf16.msra.mxu0 0
        %853 = vmatpush.bf16.msra.mxu0 0
        %854 = vmatpush.bf16.msra.mxu0 0
        %855 = vmatpush.bf16.msra.mxu0 %v820
        %856 = vmatmul.bf16.gmra.mxu0 %v811
        %v857 = vpop.f32.mrf.mxu0
        %v858 = vadd.f32 0.0, %v857
        %v859 = vpop.f32.mrf.mxu0
        %860 = vdwg.mxu0
        %v861 = vadd.f32 %v787, %v832
        %v862 = vadd.f32 %v788, %v845
        %v863 = vadd.f32 %v789, %v858
        %v864 = vld [vmem:[%s274] sm:$0x3f]
        %s865 = scalar_lea.vmem %s1, 32
        %v866 = vld [vmem:[%s865] sm:$0xf]
        %868 = vst [vmem:[#allocation1] ss:$4 sm:$0xff] %v864
        %v869 = vld.sshfl [vmem:[#allocation1] sm:$0xff pattern:$0x73625140]
        %v871 = vld.sshfl [vmem:[#allocation1 + $0x8] sm:$0xff pattern:$0x73625140]
        %v873 = vld.sshfl [vmem:[#allocation1 + $0x10] sm:$0xff pattern:$0x73625140]
        %875 = vrot.lane.b32.xlu0 %v869, 90
        %v876 = vpop.permute.xlu0 %875
        %877 = vrot.lane.b32.xlu0 %v871, 90
        %v878 = vpop.permute.xlu0 %877
        %879 = vrot.lane.b32.xlu0 %v873, 90
        %v880 = vpop.permute.xlu0 %879
        %vm881 = vcmask 736256
        %v882 = vsel %vm881, %v876, %v878
        %v883 = vsel %vm881, %v878, %v880
        %v885 = vsel %vm315, %v866, 0
        %v888 = vsel %vm319, %v882, 0
        %v891 = vsel %vm319, %v883, 0
        %v894 = vsel %vm319, %v880, 0
        %896 = vmatpush.bf16.msra.mxu0 0
        %897 = vmatpush.bf16.msra.mxu0 0
        %898 = vmatpush.bf16.msra.mxu0 0
        %899 = vmatpush.bf16.msra.mxu0 0
        %900 = vmatpush.bf16.msra.mxu0 0
        %901 = vmatpush.bf16.msra.mxu0 0
        %902 = vmatpush.bf16.msra.mxu0 0
        %903 = vmatpush.bf16.msra.mxu0 %v888
        %904 = vmatmul.bf16.gmra.mxu0 %v885
        %v905 = vpop.f32.mrf.mxu0
        %v906 = vadd.f32 0.0, %v905
        %v907 = vpop.f32.mrf.mxu0
        %908 = vdwg.mxu0
        %909 = vmatpush.bf16.msra.mxu0 0
        %910 = vmatpush.bf16.msra.mxu0 0
        %911 = vmatpush.bf16.msra.mxu0 0
        %912 = vmatpush.bf16.msra.mxu0 0
        %913 = vmatpush.bf16.msra.mxu0 0
        %914 = vmatpush.bf16.msra.mxu0 0
        %915 = vmatpush.bf16.msra.mxu0 0
        %916 = vmatpush.bf16.msra.mxu0 %v891
        %917 = vmatmul.bf16.gmra.mxu0 %v885
        %v918 = vpop.f32.mrf.mxu0
        %v919 = vadd.f32 0.0, %v918
        %v920 = vpop.f32.mrf.mxu0
        %921 = vdwg.mxu0
        %922 = vmatpush.bf16.msra.mxu0 0
        %923 = vmatpush.bf16.msra.mxu0 0
        %924 = vmatpush.bf16.msra.mxu0 0
        %925 = vmatpush.bf16.msra.mxu0 0
        %926 = vmatpush.bf16.msra.mxu0 0
        %927 = vmatpush.bf16.msra.mxu0 0
        %928 = vmatpush.bf16.msra.mxu0 0
        %929 = vmatpush.bf16.msra.mxu0 %v894
        %930 = vmatmul.bf16.gmra.mxu0 %v885
        %v931 = vpop.f32.mrf.mxu0
        %v932 = vadd.f32 0.0, %v931
        %v933 = vpop.f32.mrf.mxu0
        %934 = vdwg.mxu0
        %v935 = vadd.f32 %v861, %v906
        %v936 = vadd.f32 %v862, %v919
        %v937 = vadd.f32 %v863, %v932
        %938 = vst [vmem:[%s254] sm:$0xff] %v935
        %939 = vst [vmem:[%s254 + $0x8] sm:$0xff] %v936
        %vm940 = vcmask 261120
        %941 = vst.msk [vmem:[%s254 + $0x10] sm:$0xff] %vm940, %v937
        %v942 = vld [vmem:[%s279] sm:$0x7]
        %v944 = vperm.slane %v942, 0
        %v945 = vperm.slane %v942, 1
        %v946 = vperm.slane %v942, 2
        %v950 = vmul.f32 %v935, %v944
        %v951 = vmul.f32 %v936, %v945
        %v952 = vmul.f32 %v937, %v946
        %v953 = vadd.f32 %v950, %v951
        %v954 = vsel %vm940, %v952, 0.0
        %v955 = vadd.f32 %v953, %v954
        %956 = vadd.xlane.f32.xlu0 %v955
        %v957 = vpop.xlane.xlu0 %956
        %vm958 = vcmask 7168
        %959 = vst.msk [vmem:[%s285] sm:$0xff] %vm958, %v957
        %v960 = vmul.f32 %v950, %v935
        %v961 = vmul.f32 %v951, %v936
        %v962 = vmul.f32 %v952, %v937
        %v963 = vadd.f32 %v960, %v961
        %v964 = vsel %vm940, %v962, 0.0
        %v965 = vadd.f32 %v963, %v964
        %966 = vadd.xlane.f32.xlu0 %v965
        %v967 = vpop.xlane.xlu0 %966
        %968 = vst.msk [vmem:[%s291] sm:$0xff] %vm958, %v967
        %s969 = sand.u32 %s117, 1
        %s970 = scalar_lea.sflag [#allocation3], %s969
        %s971 = sand.u32 %s117, 1
        %s972 = smul.addr %s971, 24
        %s973 = scalar_lea.vmem [#allocation2], %s972
        %s974 = sadd.s32 %s24, %s25
        %p975 = scmp.lt.s32.totalorder %s974, 1
        %s976 = scalar_select %p975, %s974, 1
        %s977 = smul.addr %s976, 8
        %s978 = scalar_lea.vmem %s4, %s977
        %s979 = sadd.s32 %s24, %s25
        %p980 = scmp.lt.s32.totalorder %s979, 1
        %s981 = scalar_select %p980, %s979, 1
        %s982 = smul.addr %s981, 8
        %s983 = scalar_lea.vmem %s5, %s982
        // Predicated region
        $region33: #{tpu_custom_call.1} parent=31 // pred_check
          %p984 = pneg %p127
        $region34: #{tpu_custom_call.1} parent=31 // pred_check_branch
          %986 = sbr.rel (%p984) target = $region36
        $region35: #{tpu_custom_call.1} parent=31 // pred_region
          %s987 = sadd.s32 %s24, %s25
          %989 = vsyncadd %s970, 0
          %s990 = smul.addr %s987, 3
          %s991 = smul.addr %s990, 8
          %s992 = scalar_lea.hbm %s3, %s991
          %s994 = sshll.u32 %s973, 4
          %s995 = int_to_ptr.vmem [resolvable:$true] %s994
          %s996 = sshll.u32 %s992, 4
          %s997 = int_to_ptr.hbm [resolvable:$true] %s996
          %999 = dma.vmem_to_hbm [thread:$0]  %s995, 384, %s997, %s970
        $region36: #{tpu_custom_call.1} parent=31 // pred_fallthru
          _
        // Predicated region
        $region37: #{tpu_custom_call.1} parent=31 // pred_check
          %p1000 = pneg %p155
        $region38: #{tpu_custom_call.1} parent=31 // pred_check_branch
          %1002 = sbr.rel (%p1000) target = $region40
        $region39: #{tpu_custom_call.1} parent=31 // pred_region
          %s1003 = sadd.s32 %s24, %s25
        $region40: #{tpu_custom_call.1} parent=31 // pred_fallthru
          _
        // Predicated region
        $region41: #{tpu_custom_call.1} parent=31 // pred_check
          %p1004 = pneg %p183
        $region42: #{tpu_custom_call.1} parent=31 // pred_check_branch
          %1006 = sbr.rel (%p1004) target = $region44
        $region43: #{tpu_custom_call.1} parent=31 // pred_region
          %s1007 = sadd.s32 %s24, %s25
        $region44: #{tpu_custom_call.1} parent=31 // pred_fallthru
          _
      $region32: #{tpu_custom_call.1} parent=5 // pred_fallthru
        _
      %p1008 = scmp.le.s32.totalorder 2, %s15
      // Predicated region
      $region45: #{tpu_custom_call.1} parent=5 // pred_check
        %p1009 = pneg %p1008
      $region46: #{tpu_custom_call.1} parent=5 // pred_check_branch
        %1011 = sbr.rel (%p1009) target = $region48
      $region47: #{tpu_custom_call.1} parent=5 // pred_region
        %s1012 = ssub.s32 %s15, 2
        // Predicated region
        $region49: #{tpu_custom_call.1} parent=47 // pred_check
          %p1013 = pneg %p133
        $region50: #{tpu_custom_call.1} parent=47 // pred_check_branch
          %1015 = sbr.rel (%p1013) target = $region52
        $region51: #{tpu_custom_call.1} parent=47 // pred_region
          %s1016 = sand.u32 %s118, 1
          %s1017 = scalar_lea.sflag [#allocation3], %s1016
          %s1018 = sand.u32 %s118, 1
          %s1019 = smul.addr %s1018, 24
          %s1020 = scalar_lea.vmem [#allocation2], %s1019
          %1022 = dma.done %s1017, 384
        $region52: #{tpu_custom_call.1} parent=47 // pred_fallthru
          _
        // Predicated region
        $region53: #{tpu_custom_call.1} parent=47 // pred_check
          %p1023 = pneg %p161
        $region54: #{tpu_custom_call.1} parent=47 // pred_check_branch
          %1025 = sbr.rel (%p1023) target = $region56
        $region55: #{tpu_custom_call.1} parent=47 // pred_region
          %s1026 = sadd.s32 %s26, %s27
          %p1027 = scmp.lt.s32.totalorder %s1026, 1
          %s1028 = scalar_select %p1027, %s1026, 1
          %s1029 = smul.addr %s1028, 8
          %s1030 = scalar_lea.vmem %s4, %s1029
        $region56: #{tpu_custom_call.1} parent=47 // pred_fallthru
          _
        // Predicated region
        $region57: #{tpu_custom_call.1} parent=47 // pred_check
          %p1031 = pneg %p189
        $region58: #{tpu_custom_call.1} parent=47 // pred_check_branch
          %1033 = sbr.rel (%p1031) target = $region60
        $region59: #{tpu_custom_call.1} parent=47 // pred_region
          %s1034 = sadd.s32 %s26, %s27
          %p1035 = scmp.lt.s32.totalorder %s1034, 1
          %s1036 = scalar_select %p1035, %s1034, 1
          %s1037 = smul.addr %s1036, 8
          %s1038 = scalar_lea.vmem %s5, %s1037
        $region60: #{tpu_custom_call.1} parent=47 // pred_fallthru
          _
      $region48: #{tpu_custom_call.1} parent=5 // pred_fallthru
        _
    $region6: #{tpu_custom_call.1} parent=1 // loop_footer
      %s19 = sadd.s32 1, %s15
    $region7: #{tpu_custom_call.1} parent=1 // loop_footer_branch
      %14 = sbr.rel target = $region3
    $region8: #{tpu_custom_call.1} parent=1 // loop_exit
      _
    %1039 = vsyncpa [#allocation3], 1
    %s1040 = scalar_lea.sflag [#allocation3], 1
    %1041 = vsyncpa %s1040, 1

</llo_original>
